<compile_context>
chip_gen: v5e
topology: v5e:2x2
jax: 0.10.0
libtpu: 0.0.40
codegen_flags: <defaults>
</compile_context>

<pallas_src>
import math

import numpy as np

import jax
import jax.numpy as jnp
from jax.experimental import pallas as pl
from jax.experimental.pallas import tpu as pltpu


def build_pe(d_model: int, max_len: int) -> jnp.ndarray:
    """Deterministic sinusoidal positional-encoding buffer, shape [1, max_len, d_model]."""
    position = jnp.arange(max_len, dtype=jnp.float32)[:, None]                      # [L, 1]
    dim_temp = jnp.exp(
        jnp.arange(0, d_model, 2, dtype=jnp.float32) * (-math.log(10000.0) / d_model)
    )                                                                                # [D/2]
    pe = jnp.zeros((max_len, d_model), dtype=jnp.float32)
    pe = pe.at[:, 0::2].set(jnp.sin(position * dim_temp))
    pe = pe.at[:, 1::2].set(jnp.cos(position * dim_temp))
    return pe[None, :, :]


def _choose_tile_rows(total_rows: int, cols: int, itemsize: int,
                      target_bytes: int = 4 << 20) -> int:
    """Row tile ~target_bytes, rounded to the packed sublane tile for the dtype.
    With a cdiv grid it does NOT need to divide total_rows."""
    sub = max(8, 32 // max(1, itemsize))             # 8 for f32, 16 for bf16, 32 for int8/fp8
    target = max(sub, target_bytes // max(1, cols * itemsize))
    if total_rows <= target:
        return total_rows                            # full extent is always a legal block shape
    return max(sub, (target // sub) * sub)           # multiple of sub → (8,128)-legal


def make_pe_kernel(p_drop: float, training: bool, tile_rows: int, n_cols: int,
                   n_row_tiles: int):
    keep_prob = 1.0 - float(p_drop)
    apply_dropout = bool(training) and float(p_drop) > 0.0
    inv_keep = (1.0 / keep_prob) if keep_prob > 0.0 else 0.0
    # numpy scalars → jaxpr literals (NOT captured jax.Array constants).
    thresh = np.uint32(min(int(keep_prob * 4294967296.0), 4294967295))
    c_rows = np.uint32(tile_rows)
    c_cols = np.uint32(n_cols)
    c_mix0 = np.uint32(0x9E3779B9)
    c_mix1 = np.uint32(0x85EBCA6B)
    c_mix2 = np.uint32(0xC2B2AE35)

    def kernel(seed_ref, x_ref, pe_ref, o_ref):
        # Blocks are (tile_rows, n_cols); batch dim squeezed.  Math stays in x.dtype.
        y = x_ref[...] + pe_ref[...]

        if apply_dropout:
            if keep_prob <= 0.0:
                y = jnp.zeros_like(y)
            else:
                # Stateless counter-based RNG: unique 32-bit id per (valid) element,
                # mixed with the seed via murmur3 fmix32 — pure VPU u32 ops.
                step = (pl.program_id(1) * n_row_tiles + pl.program_id(0)).astype(jnp.uint32)
                row = jax.lax.broadcasted_iota(jnp.int32, y.shape, 0).astype(jnp.uint32)
                col = jax.lax.broadcasted_iota(jnp.int32, y.shape, 1).astype(jnp.uint32)
                idx = (step * c_rows + row) * c_cols + col
                h = idx ^ (seed_ref[0].astype(jnp.uint32) * c_mix0)
                h = h ^ (h >> 16)
                h = h * c_mix1
                h = h ^ (h >> 13)
                h = h * c_mix2
                h = h ^ (h >> 16)
                keep = h < thresh
                y = jnp.where(keep, y * inv_keep, jnp.zeros_like(y))

        o_ref[...] = y.astype(o_ref.dtype)

    return kernel


def positional_encoding_forward(x, pe, p_drop, *, training=False, seed=0,
                                target_tile_bytes=4 << 20):
    """x: [B, S, D];  pe: [1, max_len, D] float32.  Returns [B, S, D] in x.dtype."""
    B, S, D = x.shape
    pe_s = pe[0, :S, :].astype(x.dtype)                       # [S, D] glue slice (plain JAX)
    itemsize = jnp.dtype(x.dtype).itemsize
    L = S * D

    if L % 128 == 0:
        # Free lane-dense view: last dim is exactly 128 lanes → unmasked full-rate stores.
        D_pad = D
        rows, cols = L // 128, 128
        x_view = x.reshape(B, rows, cols)
        pe_view = pe_s.reshape(rows, cols)
    else:
        # Pad the feature dim to the next lane multiple so the kernel stays lane-dense,
        # then slice the pad off the output.
        D_pad = ((D + 127) // 128) * 128
        x_view = jnp.pad(x, ((0, 0), (0, 0), (0, D_pad - D)))
        pe_view = jnp.pad(pe_s, ((0, 0), (0, D_pad - D)))
        rows, cols = (S * D_pad) // 128, 128
        x_view = x_view.reshape(B, rows, cols)
        pe_view = pe_view.reshape(rows, cols)

    tile_rows = _choose_tile_rows(rows, cols, itemsize, target_tile_bytes)
    n_row_tiles = (rows + tile_rows - 1) // tile_rows          # cdiv grid; last block partial
    seed_arr = jnp.array([seed], dtype=jnp.int32)

    kernel = make_pe_kernel(float(p_drop), bool(training), tile_rows, cols, n_row_tiles)

    out = pl.pallas_call(
        kernel,
        out_shape=jax.ShapeDtypeStruct((B, rows, cols), x.dtype),
        grid=(n_row_tiles, B),                                 # pe-varying axis OUTER, batch INNER
        in_specs=[
            pl.BlockSpec(memory_space=pltpu.MemorySpace.SMEM),                    # seed scalar
            pl.BlockSpec((None, tile_rows, cols), lambda s, b: (b, s, 0)),        # x (batch squeezed)
            pl.BlockSpec((tile_rows, cols), lambda s, b: (s, 0)),                 # pe: resident over b
        ],
        out_specs=pl.BlockSpec((None, tile_rows, cols), lambda s, b: (b, s, 0)),
        compiler_params=pltpu.CompilerParams(
            dimension_semantics=("parallel", "parallel"),      # no reduction; v7x 2-TC friendly
            vmem_limit_bytes=32 * 1024 * 1024,                 # 3 arrays x 2 bufs x 4 MiB + headroom
        ),
    )(seed_arr, x_view, pe_view)

    if D_pad != D:
        return out.reshape(B, S, D_pad)[:, :, :D]
    return out.reshape(B, S, D)


if __name__ == "__main__":
    d_model, max_len, p_drop = 32, 16, 0.1
    B, S = 2, 8

    key = jax.random.PRNGKey(0)
    x = jax.random.normal(key, (B, S, d_model), dtype=jnp.float32)
    pe = build_pe(d_model, max_len)

    # Eval-mode forward (dropout = identity): deterministic, check against reference.
    y_eval = jax.block_until_ready(positional_encoding_forward(x, pe, p_drop, training=False))
    y_ref = x + pe[:, :S, :]
    assert y_eval.shape == (B, S, d_model)
    assert jnp.allclose(y_eval, y_ref, atol=1e-6), "eval-mode mismatch"

    # Train-mode forward (exercises the in-kernel stateless-hash dropout path).
    y_train = jax.block_until_ready(
        positional_encoding_forward(x, pe, p_drop, training=True, seed=1234)
    )
    assert y_train.shape == (B, S, d_model)
    # Every train-mode value must be either 0 (dropped) or (x+pe)/keep_prob (kept).
    keep_prob = 1.0 - p_drop
    scaled = y_ref / keep_prob
    ok = jnp.isclose(y_train, scaled, rtol=1e-4, atol=1e-5) | jnp.isclose(y_train, 0.0, atol=1e-6)
    assert bool(jnp.all(ok)), "train-mode dropout values out of expected set"

    print("KERNEL_OK")
</pallas_src>

<mosaic_0001>
module attributes {stable_mosaic.version = 11 : i64} {
  func.func @kernel(%arg0: i32, %arg1: i32, %arg2: memref<1xi32, #tpu.memory_space<smem>>, %arg3: memref<1x2x128xf32, #tpu.memory_space<vmem>>, %arg4: memref<2x128xf32, #tpu.memory_space<vmem>>, %arg5: memref<1x2x128xf32, #tpu.memory_space<vmem>>) attributes {dimension_semantics = [#tpu.dimension_semantics<parallel>, #tpu.dimension_semantics<parallel>], iteration_bounds = array<i64: 1, 2>, scalar_prefetch = 0 : i64, scratch_operands = 0 : i64, tpu.core_type = #tpu.core_type<tc>, window_params = [{transform_indices = @transform_0, window_bounds = array<i64: 1>}, {transform_indices = @transform_1, window_bounds = array<i64: 1, 2, 128>}, {transform_indices = @transform_2, window_bounds = array<i64: 2, 128>}, {transform_indices = @transform_3, window_bounds = array<i64: 1, 2, 128>}]} {
    %c0 = arith.constant 0 : index
    %c0_0 = arith.constant 0 : index
    %c0_1 = arith.constant 0 : index
    %0 = vector.load %arg3[%c0, %c0_0, %c0_1] : memref<1x2x128xf32, #tpu.memory_space<vmem>>, vector<1x2x128xf32>
    %1 = vector.shape_cast %0 : vector<1x2x128xf32> to vector<2x128xf32>
    %c0_2 = arith.constant 0 : index
    %c0_3 = arith.constant 0 : index
    %2 = vector.load %arg4[%c0_2, %c0_3] : memref<2x128xf32, #tpu.memory_space<vmem>>, vector<2x128xf32>
    %3 = arith.addf %1, %2 : vector<2x128xf32>
    %c0_4 = arith.constant 0 : index
    %c0_5 = arith.constant 0 : index
    %c0_6 = arith.constant 0 : index
    %4 = vector.load %arg5[%c0_4, %c0_5, %c0_6] : memref<1x2x128xf32, #tpu.memory_space<vmem>>, vector<1x2x128xf32>
    %5 = vector.shape_cast %4 : vector<1x2x128xf32> to vector<2x128xf32>
    %6 = vector.shape_cast %3 : vector<2x128xf32> to vector<1x2x128xf32>
    tpu.vector_store %arg5[%c0_4, %c0_5, %c0_6], %6 {strides = array<i32>} : memref<1x2x128xf32, #tpu.memory_space<vmem>>, vector<1x2x128xf32>,
    return
  }
  func.func @transform_0(%arg0: i32, %arg1: i32) -> i32 {
    %c0_i32 = arith.constant 0 : i32
    %c0_i32_0 = arith.constant 0 : i32
    return %c0_i32 : i32
  }
  func.func @transform_1(%arg0: i32, %arg1: i32) -> (i32, i32, i32) {
    %c0_i32 = arith.constant 0 : i32
    %c0_i32_0 = arith.constant 0 : i32
    return %arg1, %arg0, %c0_i32 : i32, i32, i32
  }
  func.func @transform_2(%arg0: i32, %arg1: i32) -> (i32, i32) {
    %c0_i32 = arith.constant 0 : i32
    %c0_i32_0 = arith.constant 0 : i32
    return %arg0, %c0_i32 : i32, i32
  }
  func.func @transform_3(%arg0: i32, %arg1: i32) -> (i32, i32, i32) {
    %c0_i32 = arith.constant 0 : i32
    %c0_i32_0 = arith.constant 0 : i32
    return %arg1, %arg0, %c0_i32 : i32, i32, i32
  }
}

</mosaic_0001>

<llo_original>
// kernel: tpu_custom_call.1
$region0: #{tpu_custom_call.1}
  #allocation0 [shape = 'u32[]', space=smem, size = 0x4, offset = 0x4, fixed_abs, tag = 'smem constant byte address 0x4 - core index']
  #allocation1 [shape = 'u32[72,128]{1,0:T(1,128)}', space=vmem, size = 0x9000, scoped, tag = 'internal scratch']
  #allocation2 [shape = 's32[1]{0:T(128)S(6)}', space=smem, size = 0x200, scoped, tag = 'scoped memory for tpu_custom_call.1']
  %s0 = inlined_call_operand.<no memory space> [shape: s32[1], index: 0, kind: input, shape index: {}]
  %s1 = inlined_call_operand.hbm [shape: f32[2,2,128], index: 1, kind: input, shape index: {}]
  %s2 = inlined_call_operand.vmem [shape: f32[2,128], index: 2, kind: input, shape index: {}]
  %s3 = inlined_call_operand.hbm [shape: f32[2,2,128], index: 3, kind: output, shape index: {}]
  %s4 = sld [smem:[#allocation0]]
  $region49: #{tpu_custom_call.1} parent=0
    _
  %s6 = ssub.s32 1, %s4
  %s7 = scalar_select 0, %s6, %s4
  %8 = sst [smem:[#allocation2]] %s0
  $region1: #{tpu_custom_call.1} parent=0
    #allocation3 [shape = 'u8[2048]{0}', space=vmem, size = 0x800, scoped, tag = 'input window, operand 1']
    #allocation4 [shape = 's32[2]{0}', space=sflag, size = 0x8, scoped, tag = 'scoped memory for tpu_custom_call.1']
    #allocation5 [shape = 's32[2]{0}', space=sflag, size = 0x8, scoped, tag = 'scoped memory for tpu_custom_call.1']
    #allocation6 [shape = 'u8[2048]{0}', space=vmem, size = 0x800, scoped, tag = 'output window, operand 0']
    %9 = vsyncpa [#allocation4], 0
    %s10 = scalar_lea.sflag [#allocation4], 1
    %11 = vsyncpa %s10, 0
    %12 = vsyncpa [#allocation5], 0
    %s13 = scalar_lea.sflag [#allocation5], 1
    %14 = vsyncpa %s13, 0
    loop: start=0, step=1, limit=4
    $region2: #{tpu_custom_call.1} parent=1 // loop_pre_header
      _
    $region3: #{tpu_custom_call.1} parent=1 // loop_header
      %s16 = sphi 0, %s20
      %p17 = scmp.ge.s32.totalorder %s16, 4
      %s23 = sphi 0, %s35
      %s24 = sphi 0, %s31
      %s25 = sphi 0, %s23
      %s26 = sphi 0, %s24
      %s27 = sphi 0, %s25
      %s28 = sphi 0, %s26
      %s36 = sphi 0, %s36
      %s38 = sphi 0, %s36
      %s39 = sphi 0, %s38
      %s53 = sphi 0, %s39
      %s61 = sphi 0, %s63
      %s64 = sphi 0, %s61
      %s65 = sphi 0, %s64
      %s81 = sphi 0, %s65
      %s87 = sphi 0, %s89
      %s90 = sphi 0, %s87
      %s91 = sphi 0, %s90
      %s107 = sphi 0, %s91
      %s115 = sphi 0, %s117
      %s118 = sphi 0, %s115
      %s119 = sphi 0, %s118
      %s135 = sphi 0, %s119
    $region4: #{tpu_custom_call.1} parent=1 // loop_header_branch
      %19 = sbr.rel (%p17) target = $region8
    $region5: #{tpu_custom_call.1} parent=1 // loop_body
      %s21 = ssub.s32 %s16, 1
      %s22 = ssub.s32 %s16, 2
      %s29 = sadd.s32 1, %s24
      %p30 = scmp.ge.s32.totalorder %s29, 2
      %s31 = scalar_select %p30, 0, %s29
      %s32 = sadd.s32 1, %s23
      %s33 = scalar_select %p30, %s32, %s23
      %p34 = scmp.ge.s32.totalorder %s33, 1
      %s35 = scalar_select %p34, 0, %s33
      %s37 = sadd.s32 %s36, 1
      %p40 = scmp.eq.s32.totalorder %s16, 1
      %p41 = scmp.ne.s32.totalorder %s36, %s38
      %p42 = scmp.eq.s32.totalorder %s16, 0
      %p43 = por %p41, %p42
      %p44 = scmp.ne.s32.totalorder %s36, %s38
      %p45 = scmp.eq.s32.totalorder %s21, 1
      %p46 = por %p44, %p45
      %p47 = scmp.ne.s32.totalorder %s38, %s39
      %p48 = scmp.eq.s32.totalorder %s21, 0
      %p49 = por %p47, %p48
      %p50 = scmp.ne.s32.totalorder %s38, %s39
      %p51 = scmp.eq.s32.totalorder %s22, 1
      %p52 = por %p50, %p51
      %p54 = scmp.ne.s32.totalorder %s39, %s53
      %p55 = scmp.eq.s32.totalorder %s22, 0
      %p56 = por %p54, %p55
      %s57 = ssub.s32 %s24, %s31
      %s58 = ssub.s32 %s23, %s35
      %s59 = sor.u32 %s57, %s58
      %p60 = scmp.eq.s32.totalorder %s59, 0
      %s62 = sadd.s32 %s61, 1
      %s63 = scalar_select %p60, %s61, %s62
      %p66 = pneg %p60
      %p67 = scmp.eq.s32.totalorder %s16, 1
      %p68 = por %p66, %p67
      %p69 = scmp.ne.s32.totalorder %s61, %s64
      %p70 = scmp.eq.s32.totalorder %s16, 0
      %p71 = por %p69, %p70
      %p72 = scmp.ne.s32.totalorder %s61, %s64
      %p73 = scmp.eq.s32.totalorder %s21, 1
      %p74 = por %p72, %p73
      %p75 = scmp.ne.s32.totalorder %s64, %s65
      %p76 = scmp.eq.s32.totalorder %s21, 0
      %p77 = por %p75, %p76
      %p78 = scmp.ne.s32.totalorder %s64, %s65
      %p79 = scmp.eq.s32.totalorder %s22, 1
      %p80 = por %p78, %p79
      %p82 = scmp.ne.s32.totalorder %s65, %s81
      %p83 = scmp.eq.s32.totalorder %s22, 0
      %p84 = por %p82, %p83
      %s85 = ssub.s32 %s23, %s35
      %p86 = scmp.eq.s32.totalorder %s85, 0
      %s88 = sadd.s32 %s87, 1
      %s89 = scalar_select %p86, %s87, %s88
      %p92 = pneg %p86
      %p93 = scmp.eq.s32.totalorder %s16, 1
      %p94 = por %p92, %p93
      %p95 = scmp.ne.s32.totalorder %s87, %s90
      %p96 = scmp.eq.s32.totalorder %s16, 0
      %p97 = por %p95, %p96
      %p98 = scmp.ne.s32.totalorder %s87, %s90
      %p99 = scmp.eq.s32.totalorder %s21, 1
      %p100 = por %p98, %p99
      %p101 = scmp.ne.s32.totalorder %s90, %s91
      %p102 = scmp.eq.s32.totalorder %s21, 0
      %p103 = por %p101, %p102
      %p104 = scmp.ne.s32.totalorder %s90, %s91
      %p105 = scmp.eq.s32.totalorder %s22, 1
      %p106 = por %p104, %p105
      %p108 = scmp.ne.s32.totalorder %s91, %s107
      %p109 = scmp.eq.s32.totalorder %s22, 0
      %p110 = por %p108, %p109
      %s111 = ssub.s32 %s24, %s31
      %s112 = ssub.s32 %s23, %s35
      %s113 = sor.u32 %s111, %s112
      %p114 = scmp.eq.s32.totalorder %s113, 0
      %s116 = sadd.s32 %s115, 1
      %s117 = scalar_select %p114, %s115, %s116
      %p120 = pneg %p114
      %p121 = scmp.eq.s32.totalorder %s16, 1
      %p122 = por %p120, %p121
      %p123 = scmp.ne.s32.totalorder %s115, %s118
      %p124 = scmp.eq.s32.totalorder %s16, 0
      %p125 = por %p123, %p124
      %p126 = scmp.ne.s32.totalorder %s115, %s118
      %p127 = scmp.eq.s32.totalorder %s21, 1
      %p128 = por %p126, %p127
      %p129 = scmp.ne.s32.totalorder %s118, %s119
      %p130 = scmp.eq.s32.totalorder %s21, 0
      %p131 = por %p129, %p130
      %p132 = scmp.ne.s32.totalorder %s118, %s119
      %p133 = scmp.eq.s32.totalorder %s22, 1
      %p134 = por %p132, %p133
      %p136 = scmp.ne.s32.totalorder %s119, %s135
      %p137 = scmp.eq.s32.totalorder %s22, 0
      %p138 = por %p136, %p137
      %p139 = scmp.le.s32.totalorder 1, %s16
      %p140 = scmp.lt.s32.totalorder %s16, 3
      %p141 = pnand %p139, %p140
      %p142 = pneg %p141
      // Predicated region
      $region9: #{tpu_custom_call.1} parent=5 // pred_check
        _
      $region10: #{tpu_custom_call.1} parent=5 // pred_check_branch
        %144 = sbr.rel (%p141) target = $region12
      $region11: #{tpu_custom_call.1} parent=5 // pred_region
        %s145 = ssub.s32 %s16, 1
        // Predicated region
        $region13: #{tpu_custom_call.1} parent=11 // pred_check
          %p146 = pneg %p49
        $region14: #{tpu_custom_call.1} parent=11 // pred_check_branch
          %148 = sbr.rel (%p146) target = $region16
        $region15: #{tpu_custom_call.1} parent=11 // pred_region
          _
        $region16: #{tpu_custom_call.1} parent=11 // pred_fallthru
          _
        // Predicated region
        $region17: #{tpu_custom_call.1} parent=11 // pred_check
          %p149 = pneg %p103
        $region18: #{tpu_custom_call.1} parent=11 // pred_check_branch
          %151 = sbr.rel (%p149) target = $region20
        $region19: #{tpu_custom_call.1} parent=11 // pred_region
          %p152 = scmp.lt.s32.totalorder %s25, 0
          %s153 = scalar_select %p152, %s25, 0
          %s154 = smul.addr %s153, 2
          %s155 = scalar_lea.vmem %s2, %s154
        $region20: #{tpu_custom_call.1} parent=11 // pred_fallthru
          _
      $region12: #{tpu_custom_call.1} parent=5 // pred_fallthru
        _
      %p156 = scmp.lt.s32.totalorder %s16, 2
      // Predicated region
      $region21: #{tpu_custom_call.1} parent=5 // pred_check
        %p157 = pneg %p156
      $region22: #{tpu_custom_call.1} parent=5 // pred_check_branch
        %159 = sbr.rel (%p157) target = $region24
      $region23: #{tpu_custom_call.1} parent=5 // pred_region
        // Predicated region
        $region25: #{tpu_custom_call.1} parent=23 // pred_check
          %p160 = pneg %p71
        $region26: #{tpu_custom_call.1} parent=23 // pred_check_branch
          %162 = sbr.rel (%p160) target = $region28
        $region27: #{tpu_custom_call.1} parent=23 // pred_region
          %s163 = sand.u32 %s61, 1
          %s164 = scalar_lea.sflag [#allocation4], %s163
          %s165 = sand.u32 %s61, 1
          %s166 = smul.addr %s165, 2
          %s167 = scalar_lea.vmem [#allocation3], %s166
          %169 = vsyncadd %s164, 0
          %s170 = sadd.s32 %s23, %s24
          %s171 = smul.addr %s170, 2
          %s172 = scalar_lea.hbm %s1, %s171
          %s174 = sshll.u32 %s172, 4
          %s175 = int_to_ptr.hbm [resolvable:$true] %s174
          %s176 = sshll.u32 %s167, 4
          %s177 = int_to_ptr.vmem [resolvable:$true] %s176
          %179 = dma.hbm_to_vmem [thread:$0]  %s175, 32, %s177, %s164
        $region28: #{tpu_custom_call.1} parent=23 // pred_fallthru
          _
      $region24: #{tpu_custom_call.1} parent=5 // pred_fallthru
        _
      %p180 = scmp.le.s32.totalorder 1, %s16
      %p181 = scmp.lt.s32.totalorder %s16, 3
      %p182 = pnand %p180, %p181
      %p183 = pneg %p182
      // Predicated region
      $region29: #{tpu_custom_call.1} parent=5 // pred_check
        _
      $region30: #{tpu_custom_call.1} parent=5 // pred_check_branch
        %185 = sbr.rel (%p182) target = $region32
      $region31: #{tpu_custom_call.1} parent=5 // pred_region
        %s186 = ssub.s32 %s16, 1
        %s187 = sand.u32 %s64, 1
        %s188 = scalar_lea.sflag [#allocation4], %s187
        %s189 = sand.u32 %s64, 1
        %s190 = smul.addr %s189, 2
        %s191 = scalar_lea.vmem [#allocation3], %s190
        // Predicated region
        $region33: #{tpu_custom_call.1} parent=31 // pred_check
          %p192 = pneg %p77
        $region34: #{tpu_custom_call.1} parent=31 // pred_check_branch
          %194 = sbr.rel (%p192) target = $region36
        $region35: #{tpu_custom_call.1} parent=31 // pred_region
          %196 = dma.done %s188, 32
        $region36: #{tpu_custom_call.1} parent=31 // pred_fallthru
          _
        %p197 = pneg %p49
        %p198 = pneg %p46
        %s199 = sand.u32 %s64, 1
        %s200 = scalar_lea.sflag [#allocation4], %s199
        %s201 = sand.u32 %s64, 1
        %s202 = smul.addr %s201, 2
        %s203 = scalar_lea.vmem [#allocation3], %s202
        %p204 = pneg %p77
        %p205 = pneg %p74
        %p206 = scmp.lt.s32.totalorder %s25, 0
        %s207 = scalar_select %p206, %s25, 0
        %s208 = smul.addr %s207, 2
        %s209 = scalar_lea.vmem %s2, %s208
        %p210 = pneg %p103
        %p211 = pneg %p100
        %p212 = pneg %p131
        %p213 = pneg %p128
        %s214 = sand.u32 %s118, 1
        %s215 = scalar_lea.sflag [#allocation5], %s214
        %s216 = sand.u32 %s118, 1
        %s217 = smul.addr %s216, 2
        %s218 = scalar_lea.vmem [#allocation6], %s217
        %p219 = scmp.lt.s32.totalorder %s25, 0
        %s220 = scalar_select %p219, %s25, 0
        %s221 = smul.addr %s220, 2
        %s222 = scalar_lea.vmem %s2, %s221
        %v223 = vld [vmem:[%s191] sm:$0x3]
        %v224 = vld [vmem:[%s222] sm:$0x3]
        %v225 = vadd.f32 %v223, %v224
        %226 = vst [vmem:[%s218] sm:$0x3] %v225
        %s227 = sand.u32 %s118, 1
        %s228 = scalar_lea.sflag [#allocation5], %s227
        %s229 = sand.u32 %s118, 1
        %s230 = smul.addr %s229, 2
        %s231 = scalar_lea.vmem [#allocation6], %s230
        // Predicated region
        $region37: #{tpu_custom_call.1} parent=31 // pred_check
          %p232 = pneg %p128
        $region38: #{tpu_custom_call.1} parent=31 // pred_check_branch
          %234 = sbr.rel (%p232) target = $region40
        $region39: #{tpu_custom_call.1} parent=31 // pred_region
          %236 = vsyncadd %s228, 0
          %s237 = sadd.s32 %s25, %s26
          %s238 = smul.addr %s237, 2
          %s239 = scalar_lea.hbm %s3, %s238
          %s241 = sshll.u32 %s231, 4
          %s242 = int_to_ptr.vmem [resolvable:$true] %s241
          %s243 = sshll.u32 %s239, 4
          %s244 = int_to_ptr.hbm [resolvable:$true] %s243
          %246 = dma.vmem_to_hbm [thread:$0]  %s242, 32, %s244, %s228
        $region40: #{tpu_custom_call.1} parent=31 // pred_fallthru
          _
      $region32: #{tpu_custom_call.1} parent=5 // pred_fallthru
        _
      %p247 = scmp.le.s32.totalorder 2, %s16
      // Predicated region
      $region41: #{tpu_custom_call.1} parent=5 // pred_check
        %p248 = pneg %p247
      $region42: #{tpu_custom_call.1} parent=5 // pred_check_branch
        %250 = sbr.rel (%p248) target = $region44
      $region43: #{tpu_custom_call.1} parent=5 // pred_region
        %s251 = ssub.s32 %s16, 2
        // Predicated region
        $region45: #{tpu_custom_call.1} parent=43 // pred_check
          %p252 = pneg %p134
        $region46: #{tpu_custom_call.1} parent=43 // pred_check_branch
          %254 = sbr.rel (%p252) target = $region48
        $region47: #{tpu_custom_call.1} parent=43 // pred_region
          %s255 = sand.u32 %s119, 1
          %s256 = scalar_lea.sflag [#allocation5], %s255
          %s257 = sand.u32 %s119, 1
          %s258 = smul.addr %s257, 2
          %s259 = scalar_lea.vmem [#allocation6], %s258
          %261 = dma.done %s256, 32
        $region48: #{tpu_custom_call.1} parent=43 // pred_fallthru
          _
      $region44: #{tpu_custom_call.1} parent=5 // pred_fallthru
        _
    $region6: #{tpu_custom_call.1} parent=1 // loop_footer
      %s20 = sadd.s32 1, %s16
    $region7: #{tpu_custom_call.1} parent=1 // loop_footer_branch
      %15 = sbr.rel target = $region3
    $region8: #{tpu_custom_call.1} parent=1 // loop_exit
      _
    %262 = vsyncpa [#allocation4], 1
    %s263 = scalar_lea.sflag [#allocation4], 1
    %264 = vsyncpa %s263, 1
    %265 = vsyncpa [#allocation5], 1
    %s266 = scalar_lea.sflag [#allocation5], 1
    %267 = vsyncpa %s266, 1

</llo_original>
